<compile_context>
chip_gen: v7x
topology: tpu7x:2x2x1
jax: 0.10.0
libtpu: 0.0.40
codegen_flags: <defaults>
</compile_context>

<pallas_src>
import jax
import jax.numpy as jnp
from jax import lax
from jax.experimental import pallas as pl
from jax.experimental.pallas import tpu as pltpu


_LANES = 128
_ROW_ALIGN = 32          # satisfies min sublane tile for f32(8)/bf16(16)/int8(32)
_MAX_BLOCK_ROWS = 2048   # 2048*128*4B = 1 MiB per f32 operand per block;
                         # masked path: 3 inputs x 2 buffers <= ~6 MiB VMEM,
                         # safe under v5e/v6e/v7x default scoped-VMEM limits.
_SMALL_N = 1 << 17       # below ~131k elements pure XLA beats Pallas dispatch.


def _round_up(x, m):
    return -(-x // m) * m


def _make_kernel(rows, block_rows, use_mask):
    """Build a partial-L1-sum kernel closed over static row geometry."""
    ragged = (rows % block_rows) != 0

    def _tail_mask(shape):
        # Rows >= (rows - i*block_rows) in the last block are out-of-bounds
        # garbage (no HW bounds check on VMEM reads); zero their contribution.
        valid = rows - pl.program_id(0) * block_rows
        rid = lax.broadcasted_iota(jnp.int32, shape, 0)
        return rid < valid

    def kernel_plain(p_ref, t_ref, out_ref):
        diff = jnp.abs(p_ref[...].astype(jnp.float32)
                       - t_ref[...].astype(jnp.float32))
        if ragged:
            diff = jnp.where(_tail_mask(diff.shape), diff, 0.0)
        out_ref[0, 0] = jnp.sum(diff)

    def kernel_masked(p_ref, t_ref, v_ref, out_ref):
        d = p_ref[...].astype(jnp.float32) - t_ref[...].astype(jnp.float32)
        diff = jnp.abs(d * v_ref[...].astype(jnp.float32))
        if ragged:
            diff = jnp.where(_tail_mask(diff.shape), diff, 0.0)
        out_ref[0, 0] = jnp.sum(diff)

    return kernel_masked if use_mask else kernel_plain


def _to_slab(x, rows):
    """Flatten to a lane-dense (rows, 128) slab; pads only when n % 128 != 0."""
    flat = x.reshape(-1)
    n = flat.shape[0]
    n_slab = rows * _LANES
    if n_slab != n:
        flat = jnp.pad(flat, (0, n_slab - n))   # zeros contribute 0 to the sum
    return flat.reshape(rows, _LANES)


def coord_loss(pred, target, target_valid=None, *, has_valid=False,
               reduction='mean', min_pallas_elements=_SMALL_N):
    """Pallas equivalent of CoordLoss.forward. Returns a scalar (mean/sum)."""
    assert reduction in ('mean', 'sum')
    # TODO(synk): reduction='none' (elementwise output) not wired up here.
    n = pred.size
    use_mask = has_valid and (target_valid is not None)

    # Small-input fast path: dispatch/reshape overhead dwarfs the math.
    if n < min_pallas_elements:
        p = pred.astype(jnp.float32)
        t = target.astype(jnp.float32)
        if use_mask:
            v = target_valid.astype(jnp.float32)
            diff = jnp.abs(p * v - t * v)
        else:
            diff = jnp.abs(p - t)
        return jnp.mean(diff) if reduction == 'mean' else jnp.sum(diff)

    rows = pl.cdiv(n, _LANES)

    # Block sizing: >=2 (even) roughly equal blocks when possible so a v7x
    # megacore can shard the "parallel" axis; capped at _MAX_BLOCK_ROWS and
    # aligned to the strictest streamed-dtype sublane tile.
    target_blocks = max(2, pl.cdiv(rows, _MAX_BLOCK_ROWS))
    if target_blocks % 2:
        target_blocks += 1
    block_rows = min(_MAX_BLOCK_ROWS,
                     _round_up(pl.cdiv(rows, target_blocks), _ROW_ALIGN))
    num_blocks = pl.cdiv(rows, block_rows)

    # Operands streamed in (near-)native dtype; upcast to f32 inside the kernel.
    ops = [_to_slab(pred, rows), _to_slab(target, rows)]
    if use_mask:
        v = target_valid
        if not jnp.issubdtype(v.dtype, jnp.floating):
            v = v.astype(jnp.int8)          # bool/int masks: 1 byte per element
        v = jnp.broadcast_to(v, pred.shape)
        ops.append(_to_slab(v, rows))

    kernel = _make_kernel(rows, block_rows, use_mask)
    block_spec = pl.BlockSpec((block_rows, _LANES), lambda i: (i, 0))

    partials = pl.pallas_call(
        kernel,
        out_shape=jax.ShapeDtypeStruct((num_blocks, 1), jnp.float32),
        grid_spec=pltpu.PrefetchScalarGridSpec(
            num_scalar_prefetch=0,
            grid=(num_blocks,),
            in_specs=[block_spec] * len(ops),
            out_specs=pl.BlockSpec((1, 1), lambda i: (i, 0),
                                   memory_space=pltpu.MemorySpace.SMEM),
        ),
        compiler_params=pltpu.CompilerParams(
            # Independent per-block partial sums -> parallel (both TCs on v7x).
            dimension_semantics=("parallel",)),
    )(*ops)

    total = jnp.sum(partials)
    if reduction == 'mean':
        total = total / jnp.float32(n)
    return total


if __name__ == "__main__":
    key = jax.random.PRNGKey(0)
    k1, k2, k3, k4, k5, k6 = jax.random.split(key, 6)

    # Small shapes matching the module (batch, num_joints, 3D coords).
    B, J, C = 2, 8, 3
    pred = jax.random.normal(k1, (B, J, C), dtype=jnp.float32)
    target = jax.random.normal(k2, (B, J, C), dtype=jnp.float32)
    target_valid = jax.random.bernoulli(k3, 0.8, (B, J, 1)).astype(jnp.float32)

    # Masked path, forced through the Pallas kernel even at tiny size.
    loss = coord_loss(pred, target, target_valid, has_valid=True,
                      reduction='mean', min_pallas_elements=0)
    loss = jax.block_until_ready(loss)
    ref = jnp.mean(jnp.abs(pred * target_valid - target * target_valid))
    assert jnp.allclose(loss, ref, rtol=1e-5, atol=1e-6), (loss, ref)

    # Unmasked path via the small-input fast path (pure XLA).
    loss_nv = jax.block_until_ready(
        coord_loss(pred, target, has_valid=False, reduction='mean'))
    ref_nv = jnp.mean(jnp.abs(pred - target))
    assert jnp.allclose(loss_nv, ref_nv, rtol=1e-5, atol=1e-6), (loss_nv, ref_nv)

    # Large f32 case: multi-block "parallel" grid (2x1536 rows, no padding),
    # mean and sum reductions.
    Bl, Jl, Cl = 512, 256, 3
    p_big = jax.random.normal(k4, (Bl, Jl, Cl), dtype=jnp.float32)
    t_big = jax.random.normal(k5, (Bl, Jl, Cl), dtype=jnp.float32)
    big_mean = jax.block_until_ready(
        coord_loss(p_big, t_big, has_valid=False, reduction='mean'))
    big_sum = jax.block_until_ready(
        coord_loss(p_big, t_big, has_valid=False, reduction='sum'))
    ref_mean = jnp.mean(jnp.abs(p_big - t_big))
    ref_sum = jnp.sum(jnp.abs(p_big - t_big))
    assert jnp.allclose(big_mean, ref_mean, rtol=1e-5, atol=1e-6), (
        big_mean, ref_mean)
    assert jnp.allclose(big_sum, ref_sum, rtol=1e-5, atol=1e-3), (
        big_sum, ref_sum)

    # Large bf16 + bool-mask case: native-dtype (bf16) streaming + int8 mask,
    # mixed-dtype BlockSpecs, f32 in-kernel accumulation.
    p_bf = p_big.astype(jnp.bfloat16)
    t_bf = t_big.astype(jnp.bfloat16)
    v_big = jax.random.bernoulli(k6, 0.7, (Bl, Jl, 1))
    masked = jax.block_until_ready(
        coord_loss(p_bf, t_bf, v_big, has_valid=True, reduction='mean'))
    vf = v_big.astype(jnp.float32)
    ref_masked = jnp.mean(jnp.abs(p_bf.astype(jnp.float32) * vf
                                  - t_bf.astype(jnp.float32) * vf))
    assert jnp.allclose(masked, ref_masked, rtol=1e-5, atol=1e-5), (
        masked, ref_masked)

    print("KERNEL_OK")
</pallas_src>

<mosaic_0001>
module attributes {stable_mosaic.version = 11 : i64} {
  func.func @kernel_masked(%arg0: i32, %arg1: memref<32x128xf32, #tpu.memory_space<vmem>>, %arg2: memref<32x128xf32, #tpu.memory_space<vmem>>, %arg3: memref<32x128xf32, #tpu.memory_space<vmem>>, %arg4: memref<1x1xf32, #tpu.memory_space<smem>>) attributes {dimension_semantics = [#tpu.dimension_semantics<parallel>], iteration_bounds = array<i64: 1>, scalar_prefetch = 0 : i64, scratch_operands = 0 : i64, tpu.core_type = #tpu.core_type<tc>, window_params = [{transform_indices = @transform_0, window_bounds = array<i64: 32, 128>}, {transform_indices = @transform_1, window_bounds = array<i64: 32, 128>}, {transform_indices = @transform_2, window_bounds = array<i64: 32, 128>}, {transform_indices = @transform_3, window_bounds = array<i64: 1, 1>}]} {
    %c0 = arith.constant 0 : index
    %c0_0 = arith.constant 0 : index
    %0 = vector.load %arg1[%c0, %c0_0] : memref<32x128xf32, #tpu.memory_space<vmem>>, vector<32x128xf32>
    %c0_1 = arith.constant 0 : index
    %c0_2 = arith.constant 0 : index
    %1 = vector.load %arg2[%c0_1, %c0_2] : memref<32x128xf32, #tpu.memory_space<vmem>>, vector<32x128xf32>
    %2 = arith.subf %0, %1 : vector<32x128xf32>
    %c0_3 = arith.constant 0 : index
    %c0_4 = arith.constant 0 : index
    %3 = vector.load %arg3[%c0_3, %c0_4] : memref<32x128xf32, #tpu.memory_space<vmem>>, vector<32x128xf32>
    %4 = arith.mulf %2, %3 : vector<32x128xf32>
    %5 = math.absf %4 : vector<32x128xf32>
    %c32_i32 = arith.constant 32 : i32
    %6 = arith.muli %arg0, %c32_i32 : i32
    %c1_i32 = arith.constant 1 : i32
    %7 = arith.subi %c1_i32, %6 : i32
    %8 = tpu.iota {dimensions = array<i32: 0>} : vector<32x128xi32>
    %9 = vector.broadcast %7 : i32 to vector<32x128xi32>
    %10 = arith.cmpi slt, %8, %9 : vector<32x128xi32>
    %cst = arith.constant 0.000000e+00 : f32
    %11 = vector.broadcast %cst : f32 to vector<32x128xf32>
    %12 = arith.select %10, %5, %11 : vector<32x128xi1>, vector<32x128xf32>
    %13 = vector.shape_cast %12 : vector<32x128xf32> to vector<1x32x128xf32>
    %cst_5 = arith.constant dense<0.000000e+00> : vector<1xf32>
    %14 = vector.multi_reduction <add>, %13, %cst_5 [1, 2] : vector<1x32x128xf32> to vector<1xf32>
    %15 = vector.shape_cast %14 : vector<1xf32> to vector<1x1x1xf32>
    %16 = vector.extract %15[0, 0, 0] : f32 from vector<1x1x1xf32>
    %c0_6 = arith.constant 0 : index
    %c0_7 = arith.constant 0 : index
    %17 = memref.load %arg4[%c0_6, %c0_7] : memref<1x1xf32, #tpu.memory_space<smem>>
    memref.store %16, %arg4[%c0_6, %c0_7] : memref<1x1xf32, #tpu.memory_space<smem>>
    return
  }
  func.func @transform_0(%arg0: i32) -> (i32, i32) {
    %c0_i32 = arith.constant 0 : i32
    %c0_i32_0 = arith.constant 0 : i32
    return %arg0, %c0_i32 : i32, i32
  }
  func.func @transform_1(%arg0: i32) -> (i32, i32) {
    %c0_i32 = arith.constant 0 : i32
    %c0_i32_0 = arith.constant 0 : i32
    return %arg0, %c0_i32 : i32, i32
  }
  func.func @transform_2(%arg0: i32) -> (i32, i32) {
    %c0_i32 = arith.constant 0 : i32
    %c0_i32_0 = arith.constant 0 : i32
    return %arg0, %c0_i32 : i32, i32
  }
  func.func @transform_3(%arg0: i32) -> (i32, i32) {
    %c0_i32 = arith.constant 0 : i32
    %c0_i32_0 = arith.constant 0 : i32
    return %arg0, %c0_i32 : i32, i32
  }
}

</mosaic_0001>

<llo_original>
// kernel: tpu_custom_call.1
$region0: #{tpu_custom_call.1}
  #allocation0 [shape = 'u32[]', space=smem, size = 0x4, offset = 0x4, fixed_abs, tag = 'smem constant byte address 0x4 - core index']
  #allocation1 [shape = 'u32[144,128]{1,0:T(1,128)}', space=vmem, size = 0x12000, scoped, tag = 'internal scratch']
  %s0 = inlined_call_operand.hbm [shape: f32[1,128], index: 0, kind: input, shape index: {}]
  %s1 = inlined_call_operand.vmem [shape: f32[1,128], index: 1, kind: input, shape index: {}]
  %s2 = inlined_call_operand.vmem [shape: f32[1,128], index: 2, kind: input, shape index: {}]
  %s3 = inlined_call_operand.hbm [shape: f32[1,1], index: 3, kind: output, shape index: {}]
  %s4 = sld [smem:[#allocation0]]
  $region26: #{tpu_custom_call.1} parent=0
    _
  %s6 = ssub.s32 1, %s4
  %s7 = scalar_select 0, %s6, %s4
  $region1: #{tpu_custom_call.1} parent=0
    #allocation2 [shape = 'u8[16384]{0}', space=vmem, size = 0x4000, scoped, tag = 'input window, operand 0, single buffered']
    #allocation3 [shape = 's32[1]{0}', space=sflag, size = 0x4, scoped, tag = 'scoped memory for tpu_custom_call.1']
    #allocation4 [shape = 's32[1]{0}', space=sflag, size = 0x4, scoped, tag = 'scoped memory for tpu_custom_call.1']
    #allocation5 [shape = 'u8[512]{0}', space=smem, size = 0x200, scoped, tag = 'output window, operand 0, single buffered']
    %8 = vsyncpa [#allocation3], 0
    %9 = vsyncpa [#allocation4], 0
    // Predicated region
    $region2: #{tpu_custom_call.1} parent=1 // pred_check
      _
    $region3: #{tpu_custom_call.1} parent=1 // pred_check_branch
      %11 = sbr.rel (0) target = $region5
    $region4: #{tpu_custom_call.1} parent=1 // pred_region
      %s13 = ssub.s32 512, 16
      %14 = vsyncadd [#allocation3], %s13
      %s15 = sshll.u32 [#allocation2], 4
      %s16 = int_to_ptr.vmem [resolvable:$true] %s15
      %21 = dma.hbm_to_vmem [thread:$0]  %s0, 16, %s16, [#allocation3], 16, 16, 1
    $region5: #{tpu_custom_call.1} parent=1 // pred_fallthru
      _
    // Predicated region
    $region6: #{tpu_custom_call.1} parent=1 // pred_check
      _
    $region7: #{tpu_custom_call.1} parent=1 // pred_check_branch
      %23 = sbr.rel (0) target = $region9
    $region8: #{tpu_custom_call.1} parent=1 // pred_region
      _
    $region9: #{tpu_custom_call.1} parent=1 // pred_fallthru
      _
    // Predicated region
    $region10: #{tpu_custom_call.1} parent=1 // pred_check
      _
    $region11: #{tpu_custom_call.1} parent=1 // pred_check_branch
      %25 = sbr.rel (0) target = $region13
    $region12: #{tpu_custom_call.1} parent=1 // pred_region
      _
    $region13: #{tpu_custom_call.1} parent=1 // pred_fallthru
      _
    // Predicated region
    $region14: #{tpu_custom_call.1} parent=1 // pred_check
      _
    $region15: #{tpu_custom_call.1} parent=1 // pred_check_branch
      %27 = sbr.rel (0) target = $region17
    $region16: #{tpu_custom_call.1} parent=1 // pred_region
      %28 = dma.done [#allocation3], 512
    $region17: #{tpu_custom_call.1} parent=1 // pred_fallthru
      _
    %v29 = vld [vmem:[#allocation2] sm:$0xff]
    %v30 = vld [vmem:[#allocation2 + $0x8] sm:$0xff]
    %v31 = vld [vmem:[#allocation2 + $0x10] sm:$0xff]
    %v32 = vld [vmem:[#allocation2 + $0x18] sm:$0xff]
    %v33 = vld [vmem:[%s1] sm:$0xff]
    %v34 = vld [vmem:[%s1 + $0x8] sm:$0xff]
    %v35 = vld [vmem:[%s1 + $0x10] sm:$0xff]
    %v36 = vld [vmem:[%s1 + $0x18] sm:$0xff]
    %v37 = vsub.f32 %v29, %v33
    %v38 = vsub.f32 %v30, %v34
    %v39 = vsub.f32 %v31, %v35
    %v40 = vsub.f32 %v32, %v36
    %v41 = vld [vmem:[%s2] sm:$0xff]
    %v42 = vld [vmem:[%s2 + $0x8] sm:$0xff]
    %v43 = vld [vmem:[%s2 + $0x10] sm:$0xff]
    %v44 = vld [vmem:[%s2 + $0x18] sm:$0xff]
    %v45 = vmul.f32 %v37, %v41
    %v46 = vmul.f32 %v38, %v42
    %v47 = vmul.f32 %v39, %v43
    %v48 = vmul.f32 %v40, %v44
    %v49 = vand.u32 2147483647, %v45
    %v50 = vand.u32 2147483647, %v46
    %v51 = vand.u32 2147483647, %v47
    %v52 = vand.u32 2147483647, %v48
    %s53 = smul.u32 0, 32
    %s54 = ssub.s32 1, %s53
    %v55 = vlaneseq
    %v56 = vshrl.u32 %v55, 7
    %v57 = vadd.s32 %v56, 8
    %v58 = vadd.s32 %v56, 16
    %v59 = vadd.s32 %v56, 24
    %v60 = vstv %s54
    %vm61 = vcmp.lt.s32.totalorder %v56, %v60
    %vm62 = vcmp.lt.s32.totalorder %v57, %v60
    %vm63 = vcmp.lt.s32.totalorder %v58, %v60
    %vm64 = vcmp.lt.s32.totalorder %v59, %v60
    %v65 = vsel %vm61, %v49, 0.0
    %v66 = vsel %vm62, %v50, 0.0
    %v67 = vsel %vm63, %v51, 0.0
    %v68 = vsel %vm64, %v52, 0.0
    %v69 = vadd.f32 %v65, %v66
    %v70 = vadd.f32 %v69, %v67
    %v71 = vadd.f32 %v70, %v68
    %72 = vadd.xlane.f32.xlu0 %v71
    %v73 = vpop.xlane.xlu0 %72
    %v74 = vrot.slane %v73, 4
    %v75 = vadd.f32 %v73, %v74
    %v76 = vrot.slane %v75, 2
    %v77 = vadd.f32 %v75, %v76
    %v78 = vrot.slane %v77, 1
    %v79 = vadd.f32 %v77, %v78
    %s80 = vtos %v79
    %s81 = scalar_lea.smem [#allocation5], 0
    %82 = sst [smem:[%s81]] %s80
    // Predicated region
    $region18: #{tpu_custom_call.1} parent=1 // pred_check
      _
    $region19: #{tpu_custom_call.1} parent=1 // pred_check_branch
      %84 = sbr.rel (0) target = $region21
    $region20: #{tpu_custom_call.1} parent=1 // pred_region
      %s86 = ssub.s32 16, 16
      %87 = vsyncadd [#allocation4], %s86
      %90 = dma.smem_to_hbm [#allocation5], 16, %s3, [#allocation4]
    $region21: #{tpu_custom_call.1} parent=1 // pred_fallthru
      _
    // Predicated region
    $region22: #{tpu_custom_call.1} parent=1 // pred_check
      _
    $region23: #{tpu_custom_call.1} parent=1 // pred_check_branch
      %92 = sbr.rel (0) target = $region25
    $region24: #{tpu_custom_call.1} parent=1 // pred_region
      %93 = dma.done [#allocation4], 16
    $region25: #{tpu_custom_call.1} parent=1 // pred_fallthru
      _
    %94 = sfence
    %95 = vsyncpa [#allocation3], 1
    %96 = vsyncpa [#allocation4], 1

</llo_original>
